<compile_context>
chip_gen: v5e
topology: v5e:2x2
jax: 0.10.0
libtpu: 0.0.40
codegen_flags: <defaults>
</compile_context>

<pallas_src>
import jax
import jax.numpy as jnp
from jax.experimental import pallas as pl
from jax.experimental.pallas import tpu as pltpu

IN_FEATURES = 8
OUT_FEATURES = 4

PACK = 32                         # batch rows packed per "wide" row
PACKED_IN = PACK * IN_FEATURES    # 256  (MXU K dim)
PACKED_OUT = PACK * OUT_FEATURES  # 128  (lane-dense output width)

# Max packed rows per grid step: 4096 -> 4 MiB in + 2 MiB out (f32),
# ~12.5 MiB double-buffered; safely inside the 32 MiB scoped VMEM limit on
# v5e/v6e/v7x while keeping per-step overhead ~10% of DMA even on v7x.
TR_MAX = 4096


def _round_up(x, m):
    return (x + m - 1) // m * m


def _gamma_extractor_kernel(x_ref, w_ref, b_ref, o_ref):
    # x_ref: [TR, 256]                      streamed batch tile
    # w_ref: [256, 128] = kron(I_32, W^T)   resident across the grid
    # b_ref: [1, 128]   = tile(bias, 32)    resident across the grid
    # o_ref: [TR, 128]
    y = jnp.dot(x_ref[...], w_ref[...], preferred_element_type=jnp.float32)
    y = y + b_ref[...]
    # softplus matching torch.nn.functional.softplus (beta=1, threshold=20):
    # x if x > 20 else log1p(exp(x)); the min-guard keeps the unselected
    # branch finite so the select never sees inf.
    sp = jnp.where(y > 20.0, y, jnp.log1p(jnp.exp(jnp.minimum(y, 20.0))))
    o_ref[...] = sp.astype(o_ref.dtype)


def gamma_extractor_forward(latent, weight, bias):
    """latent: [B, 8]; weight: [4, 8] (torch nn.Linear layout); bias: [4]."""
    B = latent.shape[0]
    dtype = latent.dtype

    # Round batch up to a multiple of PACK so [B,8] -> [B/32,256] is a free
    # row-major reshape.  For production B this is usually already true and
    # the pad is a no-op; the padded rows only produce softplus(bias) values
    # that are sliced away below (nothing reduces across rows).
    b_pad = _round_up(max(B, 1), PACK)
    x = latent if b_pad == B else jnp.pad(latent, ((0, b_pad - B), (0, 0)))
    x_packed = x.reshape(b_pad // PACK, PACKED_IN)          # free reshape

    # Tiny (128 KiB) block-diagonal weight + tiled bias, built once in the
    # wrapper; constant block index keeps them resident in VMEM.
    w_big = jnp.kron(jnp.eye(PACK, dtype=jnp.float32),
                     weight.astype(jnp.float32).T).astype(dtype)
    b_big = jnp.tile(bias.astype(jnp.float32), PACK).reshape(1, PACKED_OUT)

    rows = b_pad // PACK
    if rows <= 8:
        tr = rows                                           # one full-extent block
    else:
        # >= 2 grid steps (both v7x TensorCores get work under "parallel"),
        # capped at TR_MAX; tr stays a multiple of 8 (sublane quantum).
        tr = min(TR_MAX, _round_up(pl.cdiv(rows, 2), 8))
    grid = (pl.cdiv(rows, tr),)   # tail block is padded/masked by Pallas

    out_packed = pl.pallas_call(
        _gamma_extractor_kernel,
        out_shape=jax.ShapeDtypeStruct((rows, PACKED_OUT), dtype),
        grid_spec=pltpu.PrefetchScalarGridSpec(
            num_scalar_prefetch=0,
            grid=grid,
            in_specs=[
                # streamed input: one packed-row tile per grid step
                pl.BlockSpec((tr, PACKED_IN), lambda i: (i, 0)),
                # weight / bias: constant block index -> resident in VMEM
                pl.BlockSpec((PACKED_IN, PACKED_OUT), lambda i: (0, 0)),
                pl.BlockSpec((1, PACKED_OUT), lambda i: (0, 0)),
            ],
            out_specs=pl.BlockSpec((tr, PACKED_OUT), lambda i: (i, 0)),
        ),
        compiler_params=pltpu.CompilerParams(
            dimension_semantics=("parallel",),   # shard row-tiles across TCs
            vmem_limit_bytes=32 * 1024 * 1024,   # explicit; fits all generations
        ),
    )(x_packed, w_big, b_big)

    out = out_packed.reshape(b_pad, OUT_FEATURES)           # free reshape back
    if b_pad != B:
        out = out[:B]
    # The 0:2 / 2:4 column slices are part of the module's output contract.
    return {
        ("params", "healing", "concentration"): out[..., 0:2],
        ("params", "healing", "rate"): out[..., 2:4],
    }


if __name__ == "__main__":
    key = jax.random.PRNGKey(0)
    k_x, k_w, k_b = jax.random.split(key, 3)

    # Deterministic init mimicking PyTorch Linear's uniform(-1/sqrt(in), 1/sqrt(in)).
    bound = 1.0 / jnp.sqrt(float(IN_FEATURES))
    weight = jax.random.uniform(
        k_w, (OUT_FEATURES, IN_FEATURES), dtype=jnp.float32,
        minval=-bound, maxval=bound)
    bias = jax.random.uniform(
        k_b, (OUT_FEATURES,), dtype=jnp.float32, minval=-bound, maxval=bound)

    # Small input consistent with the module: batch=2, features=8.
    latent = jax.random.normal(k_x, (2, IN_FEATURES), dtype=jnp.float32)

    result = gamma_extractor_forward(latent, weight, bias)
    jax.block_until_ready(result)

    # Cross-check against a plain-JAX reference (y = x @ W.T + b; softplus).
    ref_y = latent @ weight.T + bias
    ref_sp = jnp.where(ref_y > 20.0, ref_y,
                       jnp.log1p(jnp.exp(jnp.minimum(ref_y, 20.0))))
    assert jnp.allclose(result[("params", "healing", "concentration")],
                        ref_sp[..., 0:2], atol=1e-5)
    assert jnp.allclose(result[("params", "healing", "rate")],
                        ref_sp[..., 2:4], atol=1e-5)

    print("KERNEL_OK")
</pallas_src>

<mosaic_0001>
module attributes {stable_mosaic.version = 11 : i64} {
  func.func @_gamma_extractor_kernel(%arg0: i32, %arg1: memref<1x256xf32, #tpu.memory_space<vmem>>, %arg2: memref<256x128xf32, #tpu.memory_space<vmem>>, %arg3: memref<1x128xf32, #tpu.memory_space<vmem>>, %arg4: memref<1x128xf32, #tpu.memory_space<vmem>>) attributes {dimension_semantics = [#tpu.dimension_semantics<parallel>], iteration_bounds = array<i64: 1>, scalar_prefetch = 0 : i64, scratch_operands = 0 : i64, tpu.core_type = #tpu.core_type<tc>, window_params = [{transform_indices = @transform_0, window_bounds = array<i64: 1, 256>}, {pipeline_mode = #tpu.pipeline_mode<synchronous>, transform_indices = @transform_1, window_bounds = array<i64: 256, 128>}, {pipeline_mode = #tpu.pipeline_mode<synchronous>, transform_indices = @transform_2, window_bounds = array<i64: 1, 128>}, {transform_indices = @transform_3, window_bounds = array<i64: 1, 128>}]} {
    %c0 = arith.constant 0 : index
    %c0_0 = arith.constant 0 : index
    %0 = vector.load %arg1[%c0, %c0_0] : memref<1x256xf32, #tpu.memory_space<vmem>>, vector<1x256xf32>
    %c0_1 = arith.constant 0 : index
    %c0_2 = arith.constant 0 : index
    %1 = vector.load %arg2[%c0_1, %c0_2] : memref<256x128xf32, #tpu.memory_space<vmem>>, vector<256x128xf32>
    %cst = arith.constant dense<0.000000e+00> : vector<1x128xf32>
    %2 = tpu.matmul %0, %1, %cst {dimension_numbers = #tpu.dot_dimension_numbers<[1], [0], [0], [1], [0, 0, 1, 1], [], []>} : vector<1x256xf32>, vector<256x128xf32>, vector<1x128xf32> -> vector<1x128xf32>
    %c0_3 = arith.constant 0 : index
    %c0_4 = arith.constant 0 : index
    %3 = vector.load %arg3[%c0_3, %c0_4] : memref<1x128xf32, #tpu.memory_space<vmem>>, vector<1x128xf32>
    %4 = arith.addf %2, %3 : vector<1x128xf32>
    %cst_5 = arith.constant 2.000000e+01 : f32
    %5 = vector.broadcast %cst_5 : f32 to vector<1x128xf32>
    %6 = arith.cmpf ogt, %4, %5 : vector<1x128xf32>
    %cst_6 = arith.constant 2.000000e+01 : f32
    %7 = vector.broadcast %cst_6 : f32 to vector<1x128xf32>
    %8 = arith.minimumf %4, %7 : vector<1x128xf32>
    %9 = math.exp %8 : vector<1x128xf32>
    %10 = math.log1p %9 : vector<1x128xf32>
    %11 = arith.select %6, %4, %10 : vector<1x128xi1>, vector<1x128xf32>
    %c0_7 = arith.constant 0 : index
    %c0_8 = arith.constant 0 : index
    %12 = vector.load %arg4[%c0_7, %c0_8] : memref<1x128xf32, #tpu.memory_space<vmem>>, vector<1x128xf32>
    tpu.vector_store %arg4[%c0_7, %c0_8], %11 {strides = array<i32>} : memref<1x128xf32, #tpu.memory_space<vmem>>, vector<1x128xf32>,
    return
  }
  func.func @transform_0(%arg0: i32) -> (i32, i32) {
    %c0_i32 = arith.constant 0 : i32
    %c0_i32_0 = arith.constant 0 : i32
    return %arg0, %c0_i32 : i32, i32
  }
  func.func @transform_1(%arg0: i32) -> (i32, i32) {
    %c0_i32 = arith.constant 0 : i32
    %c0_i32_0 = arith.constant 0 : i32
    %c0_i32_1 = arith.constant 0 : i32
    return %c0_i32, %c0_i32_0 : i32, i32
  }
  func.func @transform_2(%arg0: i32) -> (i32, i32) {
    %c0_i32 = arith.constant 0 : i32
    %c0_i32_0 = arith.constant 0 : i32
    %c0_i32_1 = arith.constant 0 : i32
    return %c0_i32, %c0_i32_0 : i32, i32
  }
  func.func @transform_3(%arg0: i32) -> (i32, i32) {
    %c0_i32 = arith.constant 0 : i32
    %c0_i32_0 = arith.constant 0 : i32
    return %arg0, %c0_i32 : i32, i32
  }
}

</mosaic_0001>

<llo_original>
// kernel: tpu_custom_call.1
$region0: #{tpu_custom_call.1}
  #allocation0 [shape = 'u32[]', space=smem, size = 0x4, offset = 0x4, fixed_abs, tag = 'smem constant byte address 0x4 - core index']
  #allocation1 [shape = 'u32[72,128]{1,0:T(1,128)}', space=vmem, size = 0x9000, scoped, tag = 'internal scratch']
  %s0 = inlined_call_operand.hbm [shape: f32[1,256], index: 0, kind: input, shape index: {}]
  %s1 = inlined_call_operand.hbm [shape: f32[256,128], index: 1, kind: input, shape index: {}]
  %s2 = inlined_call_operand.vmem [shape: f32[1,128], index: 2, kind: input, shape index: {}]
  %s3 = inlined_call_operand.hbm [shape: f32[1,128], index: 3, kind: output, shape index: {}]
  %s4 = sld [smem:[#allocation0]]
  $region30: #{tpu_custom_call.1} parent=0
    _
  %s6 = ssub.s32 1, %s4
  %s7 = scalar_select 0, %s6, %s4
  $region1: #{tpu_custom_call.1} parent=0
    #allocation2 [shape = 'u8[1024]{0}', space=vmem, size = 0x400, scoped, tag = 'input window, operand 0, single buffered']
    #allocation3 [shape = 's32[1]{0}', space=sflag, size = 0x4, scoped, tag = 'scoped memory for tpu_custom_call.1']
    #allocation4 [shape = 's32[1]{0}', space=sflag, size = 0x4, scoped, tag = 'scoped memory for tpu_custom_call.1']
    #allocation5 [shape = 'u8[131072]{0}', space=vmem, size = 0x20000, scoped, tag = 'input window, operand 1, single buffered']
    #allocation6 [shape = 's32[1]{0}', space=sflag, size = 0x4, scoped, tag = 'scoped memory for tpu_custom_call.1']
    #allocation7 [shape = 'u8[512]{0}', space=vmem, size = 0x400, scoped, tag = 'output window, operand 0, single buffered']
    %8 = vsyncpa [#allocation3], 0
    %9 = vsyncpa [#allocation6], 0
    %10 = vsyncpa [#allocation4], 0
    // Predicated region
    $region2: #{tpu_custom_call.1} parent=1 // pred_check
      _
    $region3: #{tpu_custom_call.1} parent=1 // pred_check_branch
      %12 = sbr.rel (0) target = $region5
    $region4: #{tpu_custom_call.1} parent=1 // pred_region
      %14 = vsyncadd [#allocation3], 0
      %s16 = sshll.u32 %s0, 4
      %s17 = int_to_ptr.hbm [resolvable:$true] %s16
      %s18 = sshll.u32 [#allocation2], 4
      %s19 = int_to_ptr.vmem [resolvable:$true] %s18
      %21 = dma.hbm_to_vmem [thread:$0]  %s17, 32, %s19, [#allocation3]
    $region5: #{tpu_custom_call.1} parent=1 // pred_fallthru
      _
    // Predicated region
    $region6: #{tpu_custom_call.1} parent=1 // pred_check
      _
    $region7: #{tpu_custom_call.1} parent=1 // pred_check_branch
      %23 = sbr.rel (0) target = $region9
    $region8: #{tpu_custom_call.1} parent=1 // pred_region
      %25 = vsyncadd [#allocation6], 0
      %s26 = sshll.u32 %s1, 4
      %s27 = int_to_ptr.hbm [resolvable:$true] %s26
      %s28 = sshll.u32 [#allocation5], 4
      %s29 = int_to_ptr.vmem [resolvable:$true] %s28
      %34 = dma.hbm_to_vmem [thread:$0]  %s27, 4096, %s29, [#allocation6], 128, 128, 8
    $region9: #{tpu_custom_call.1} parent=1 // pred_fallthru
      _
    // Predicated region
    $region10: #{tpu_custom_call.1} parent=1 // pred_check
      _
    $region11: #{tpu_custom_call.1} parent=1 // pred_check_branch
      %36 = sbr.rel (0) target = $region13
    $region12: #{tpu_custom_call.1} parent=1 // pred_region
      _
    $region13: #{tpu_custom_call.1} parent=1 // pred_fallthru
      _
    // Predicated region
    $region14: #{tpu_custom_call.1} parent=1 // pred_check
      _
    $region15: #{tpu_custom_call.1} parent=1 // pred_check_branch
      %38 = sbr.rel (0) target = $region17
    $region16: #{tpu_custom_call.1} parent=1 // pred_region
      %40 = dma.done [#allocation3], 32
    $region17: #{tpu_custom_call.1} parent=1 // pred_fallthru
      _
    // Predicated region
    $region18: #{tpu_custom_call.1} parent=1 // pred_check
      _
    $region19: #{tpu_custom_call.1} parent=1 // pred_check_branch
      %42 = sbr.rel (0) target = $region21
    $region20: #{tpu_custom_call.1} parent=1 // pred_region
      %44 = dma.done [#allocation6], 4096
    $region21: #{tpu_custom_call.1} parent=1 // pred_fallthru
      _
    %v45 = vld [vmem:[#allocation2] sm:$0x3]
    %v46 = vld [vmem:[#allocation5] sm:$0xff]
    %v47 = vld [vmem:[#allocation5 + $0x8] sm:$0xff]
    %v48 = vld [vmem:[#allocation5 + $0x10] sm:$0xff]
    %v49 = vld [vmem:[#allocation5 + $0x18] sm:$0xff]
    %v50 = vld [vmem:[#allocation5 + $0x20] sm:$0xff]
    %v51 = vld [vmem:[#allocation5 + $0x28] sm:$0xff]
    %v52 = vld [vmem:[#allocation5 + $0x30] sm:$0xff]
    %v53 = vld [vmem:[#allocation5 + $0x38] sm:$0xff]
    %v54 = vld [vmem:[#allocation5 + $0x40] sm:$0xff]
    %v55 = vld [vmem:[#allocation5 + $0x48] sm:$0xff]
    %v56 = vld [vmem:[#allocation5 + $0x50] sm:$0xff]
    %v57 = vld [vmem:[#allocation5 + $0x58] sm:$0xff]
    %v58 = vld [vmem:[#allocation5 + $0x60] sm:$0xff]
    %v59 = vld [vmem:[#allocation5 + $0x68] sm:$0xff]
    %v60 = vld [vmem:[#allocation5 + $0x70] sm:$0xff]
    %v61 = vld [vmem:[#allocation5 + $0x78] sm:$0xff]
    %v62 = vld [vmem:[#allocation5 + $0x80] sm:$0xff]
    %v63 = vld [vmem:[#allocation5 + $0x88] sm:$0xff]
    %v64 = vld [vmem:[#allocation5 + $0x90] sm:$0xff]
    %v65 = vld [vmem:[#allocation5 + $0x98] sm:$0xff]
    %v66 = vld [vmem:[#allocation5 + $0xa0] sm:$0xff]
    %v67 = vld [vmem:[#allocation5 + $0xa8] sm:$0xff]
    %v68 = vld [vmem:[#allocation5 + $0xb0] sm:$0xff]
    %v69 = vld [vmem:[#allocation5 + $0xb8] sm:$0xff]
    %v70 = vld [vmem:[#allocation5 + $0xc0] sm:$0xff]
    %v71 = vld [vmem:[#allocation5 + $0xc8] sm:$0xff]
    %v72 = vld [vmem:[#allocation5 + $0xd0] sm:$0xff]
    %v73 = vld [vmem:[#allocation5 + $0xd8] sm:$0xff]
    %v74 = vld [vmem:[#allocation5 + $0xe0] sm:$0xff]
    %v75 = vld [vmem:[#allocation5 + $0xe8] sm:$0xff]
    %v76 = vld [vmem:[#allocation5 + $0xf0] sm:$0xff]
    %v77 = vld [vmem:[#allocation5 + $0xf8] sm:$0xff]
    %v78 = vld [vmem:[%s2] sm:$0x1]
    %v80 = vperm.slane %v45, 0
    %v81 = vperm.slane %v45, 1
    %84 = vmatpush.msra.mxu0 %v61
    %85 = vmatpush.msra.mxu0 %v60
    %86 = vmatpush.msra.mxu0 %v59
    %87 = vmatpush.msra.mxu0 %v58
    %88 = vmatpush.msra.mxu0 %v57
    %89 = vmatpush.msra.mxu0 %v56
    %90 = vmatpush.msra.mxu0 %v55
    %91 = vmatpush.msra.mxu0 %v54
    %92 = vmatpush.msra.mxu0 %v53
    %93 = vmatpush.msra.mxu0 %v52
    %94 = vmatpush.msra.mxu0 %v51
    %95 = vmatpush.msra.mxu0 %v50
    %96 = vmatpush.msra.mxu0 %v49
    %97 = vmatpush.msra.mxu0 %v48
    %98 = vmatpush.msra.mxu0 %v47
    %99 = vmatpush.msra.mxu0 %v46
    %100 = vmatmul.f32.gmra.mxu0 %v80
    %v101 = vpop.f32.mrf.mxu0
    %v102 = vadd.f32 %v78, %v101
    %103 = vdwg.mxu0
    %104 = vmatpush.msra.mxu0 %v77
    %105 = vmatpush.msra.mxu0 %v76
    %106 = vmatpush.msra.mxu0 %v75
    %107 = vmatpush.msra.mxu0 %v74
    %108 = vmatpush.msra.mxu0 %v73
    %109 = vmatpush.msra.mxu0 %v72
    %110 = vmatpush.msra.mxu0 %v71
    %111 = vmatpush.msra.mxu0 %v70
    %112 = vmatpush.msra.mxu0 %v69
    %113 = vmatpush.msra.mxu0 %v68
    %114 = vmatpush.msra.mxu0 %v67
    %115 = vmatpush.msra.mxu0 %v66
    %116 = vmatpush.msra.mxu0 %v65
    %117 = vmatpush.msra.mxu0 %v64
    %118 = vmatpush.msra.mxu0 %v63
    %119 = vmatpush.msra.mxu0 %v62
    %120 = vmatmul.f32.gmra.mxu0 %v81
    %v121 = vpop.f32.mrf.mxu0
    %v122 = vadd.f32 %v102, %v121
    %123 = vdwg.mxu0
    %vm124 = vcmp.gt.f32.partialorder %v122, 20.0
    %v125 = vmin.f32 %v122, 20.0
    %v126 = vmul.f32 %v125, 1.442695
    %v127 = vpow.pop %v126
    %v128 = vadd.f32 %v127, 1.0
    %v129 = vlog2.pop %v128
    %v130 = vmul.f32 %v129, 0.6931472
    %v131 = vmul.f32 -0.5, %v127
    %v132 = vadd.f32 %v131, 1.0
    %v133 = vmul.f32 %v132, %v127
    %v134 = vand.u32 2147483647, %v127
    %vm135 = vcmp.lt.f32.partialorder %v134, 0.0004427343
    %v136 = vsel %vm135, %v133, %v130
    %v137 = vsel %vm124, %v122, %v136
    %138 = vst [vmem:[#allocation7] sm:$0x1] %v137
    // Predicated region
    $region22: #{tpu_custom_call.1} parent=1 // pred_check
      _
    $region23: #{tpu_custom_call.1} parent=1 // pred_check_branch
      %140 = sbr.rel (0) target = $region25
    $region24: #{tpu_custom_call.1} parent=1 // pred_region
      %142 = vsyncadd [#allocation4], 0
      %s144 = sshll.u32 [#allocation7], 4
      %s145 = int_to_ptr.vmem [resolvable:$true] %s144
      %s146 = sshll.u32 %s3, 4
      %s147 = int_to_ptr.hbm [resolvable:$true] %s146
      %149 = dma.vmem_to_hbm [thread:$0]  %s145, 16, %s147, [#allocation4]
    $region25: #{tpu_custom_call.1} parent=1 // pred_fallthru
      _
    // Predicated region
    $region26: #{tpu_custom_call.1} parent=1 // pred_check
      _
    $region27: #{tpu_custom_call.1} parent=1 // pred_check_branch
      %151 = sbr.rel (0) target = $region29
    $region28: #{tpu_custom_call.1} parent=1 // pred_region
      %153 = dma.done [#allocation4], 16
    $region29: #{tpu_custom_call.1} parent=1 // pred_fallthru
      _
    %154 = vsyncpa [#allocation3], 1
    %155 = vsyncpa [#allocation6], 1
    %156 = vsyncpa [#allocation4], 1

</llo_original>
